<compile_context>
chip_gen: v6e
topology: v6e:2x2x1
jax: 0.10.0
libtpu: 0.0.40
codegen_flags: <defaults>
</compile_context>

<pallas_src>
import functools

import jax
import jax.numpy as jnp
from jax.experimental import pallas as pl
from jax.experimental.pallas import tpu as pltpu

HIDDEN = 256
LANES = 128


def _round_up(n, m):
    return ((n + m - 1) // m) * m


def _policy_kernel(x_ref, w1_ref, b1_ref, w2_ref, b2_ref, w3_ref, b3_ref,
                   *rest, a_pad, deterministic):
    if deterministic:
        (out_ref,) = rest
    else:
        eps_ref, out_ref = rest

    x = x_ref[...]                                            # bf16 [TB, S]

    h1 = jnp.dot(x, w1_ref[...],
                 preferred_element_type=jnp.float32) + b1_ref[...]
    h1 = jnp.maximum(h1, 0.0)

    h2 = jnp.dot(h1.astype(jnp.bfloat16), w2_ref[...],
                 preferred_element_type=jnp.float32) + b2_ref[...]
    h2 = jnp.maximum(h2, 0.0)

    y = jnp.dot(h2.astype(jnp.bfloat16), w3_ref[...],
                preferred_element_type=jnp.float32) + b3_ref[...]

    mu = y[:, :a_pad]                                         # lane-aligned slice
    if deterministic:
        out_ref[...] = jnp.tanh(mu)
    else:
        log_sigma = jnp.clip(y[:, a_pad:], -20.0, 2.0)        # f32 elementwise tail
        sigma = jnp.exp(log_sigma)
        sample = mu + sigma * eps_ref[...]                    # reparameterized sample
        out_ref[...] = jnp.tanh(sample)


def prepare_params(params_f32, action_dim):
    """Convert f32 PyTorch-layout params into the kernel's padded/bf16 layout.

    W3/b3 heads are zero-padded so that mu occupies lanes [0:A_PAD) and
    log_sigma lanes [A_PAD:2*A_PAD); padded columns have zero weight/bias.
    """
    w1, b1, w2, b2, w3, b3 = params_f32
    a_pad = _round_up(max(action_dim, 1), LANES)

    w3p = jnp.zeros((HIDDEN, 2 * a_pad), jnp.float32)
    w3p = w3p.at[:, :action_dim].set(w3[:, :action_dim])
    w3p = w3p.at[:, a_pad:a_pad + action_dim].set(w3[:, action_dim:])

    b3p = jnp.zeros((1, 2 * a_pad), jnp.float32)
    b3p = b3p.at[:, :action_dim].set(b3[:, :action_dim])
    b3p = b3p.at[:, a_pad:a_pad + action_dim].set(b3[:, action_dim:])

    return (w1.astype(jnp.bfloat16), b1,
            w2.astype(jnp.bfloat16), b2,
            w3p.astype(jnp.bfloat16), b3p)


def policy_forward(x, params, eps=None, *, action_dim, deterministic=False,
                   block_batch=256):
    """SAC policy forward pass as a single batch-tiled Pallas kernel.

    `params` must be the output of `prepare_params` (bf16 weights, padded W3/b3).
    `eps ~ N(0, 1)` of shape [B, action_dim] drives the reparameterized sample;
    it is ignored (and may be None) when deterministic=True.
    """
    w1, b1, w2, b2, w3, b3 = params
    B, S = x.shape
    a_pad = w3.shape[1] // 2

    # Batch tile: multiple of 8 sublanes, capped at block_batch (<= 256 keeps
    # the per-step working set well inside v7x's 32 MiB scoped VMEM).
    tb = min(block_batch, _round_up(B, 8))
    b_pad = _round_up(B, tb)

    x_p = jnp.zeros((b_pad, S), jnp.bfloat16).at[:B].set(x.astype(jnp.bfloat16))

    rep = lambda a: pl.BlockSpec(a.shape, lambda i: (0, 0))   # replicated per step

    inputs = [x_p, w1, b1, w2, b2, w3, b3]
    in_specs = [
        pl.BlockSpec((tb, S), lambda i: (i, 0)),
        rep(w1), rep(b1), rep(w2), rep(b2), rep(w3), rep(b3),
    ]
    if not deterministic:
        eps_p = jnp.zeros((b_pad, a_pad), jnp.float32)
        eps_p = eps_p.at[:B, :action_dim].set(eps.astype(jnp.float32))
        inputs.append(eps_p)
        in_specs.append(pl.BlockSpec((tb, a_pad), lambda i: (i, 0)))

    kernel = functools.partial(_policy_kernel, a_pad=a_pad,
                               deterministic=deterministic)

    flops = 2 * b_pad * (S * HIDDEN + HIDDEN * HIDDEN + HIDDEN * 2 * a_pad)
    transcendentals = b_pad * (a_pad if deterministic else 2 * a_pad)
    bytes_accessed = (
        2 * (S * HIDDEN + HIDDEN * HIDDEN + HIDDEN * 2 * a_pad)   # bf16 weights
        + 4 * (2 * HIDDEN + 2 * a_pad)                            # f32 biases
        + 2 * b_pad * S                                           # bf16 x
        + (0 if deterministic else 4 * b_pad * a_pad)             # f32 eps
        + 4 * b_pad * a_pad)                                      # f32 out

    out_padded = pl.pallas_call(
        kernel,
        out_shape=jax.ShapeDtypeStruct((b_pad, a_pad), jnp.float32),
        grid=(b_pad // tb,),
        in_specs=in_specs,
        out_specs=pl.BlockSpec((tb, a_pad), lambda i: (i, 0)),
        compiler_params=pltpu.CompilerParams(
            dimension_semantics=("parallel",)),
        cost_estimate=pl.CostEstimate(
            flops=flops,
            transcendentals=transcendentals,
            bytes_accessed=bytes_accessed),
    )(*inputs)

    # Free layout plumbing: strip batch + lane padding outside the kernel.
    return out_padded[:B, :action_dim]


def init_params(key, state_dim, action_dim):
    """f32 init mimicking nn.Linear default (U(-1/sqrt(fan_in), +1/sqrt(fan_in)))."""
    def linear(k, fan_in, fan_out):
        k1, k2 = jax.random.split(k)
        bound = 1.0 / jnp.sqrt(fan_in)
        w = jax.random.uniform(k1, (fan_in, fan_out), jnp.float32, -bound, bound)
        b = jax.random.uniform(k2, (1, fan_out), jnp.float32, -bound, bound)
        return w, b

    k1, k2, k3 = jax.random.split(key, 3)
    w1, b1 = linear(k1, state_dim, HIDDEN)
    w2, b2 = linear(k2, HIDDEN, HIDDEN)
    w3, b3 = linear(k3, HIDDEN, 2 * action_dim)
    return (w1, b1, w2, b2, w3, b3)


def policy_forward_ref(x, prepared, eps, *, action_dim, deterministic=False):
    """Pure-JAX reference using the same prepared (bf16/padded) params."""
    w1, b1, w2, b2, w3, b3 = prepared
    a_pad = w3.shape[1] // 2
    xb = x.astype(jnp.bfloat16)
    h1 = jax.nn.relu(jnp.dot(xb, w1, preferred_element_type=jnp.float32) + b1)
    h2 = jax.nn.relu(jnp.dot(h1.astype(jnp.bfloat16), w2,
                             preferred_element_type=jnp.float32) + b2)
    y = jnp.dot(h2.astype(jnp.bfloat16), w3,
                preferred_element_type=jnp.float32) + b3
    mu = y[:, :action_dim]
    if deterministic:
        return jnp.tanh(mu)
    sigma = jnp.exp(jnp.clip(y[:, a_pad:a_pad + action_dim], -20.0, 2.0))
    return jnp.tanh(mu + sigma * eps)


# TODO(synk): log_pi / mu_sigma methods of the PyTorch module are not exposed
# as kernels here; only forward() is implemented.

if __name__ == "__main__":
    batch = 2
    state_dim = 16
    action_dim = 4

    key = jax.random.PRNGKey(0)
    k_params, k_x, k_eps = jax.random.split(key, 3)

    params_f32 = init_params(k_params, state_dim, action_dim)
    params = prepare_params(params_f32, action_dim)

    x = jax.random.normal(k_x, (batch, state_dim), jnp.float32)
    eps = jax.random.normal(k_eps, (batch, action_dim), jnp.float32)

    # stochastic forward (rsample path)
    out = policy_forward(x, params, eps, action_dim=action_dim,
                         deterministic=False)
    out = jax.block_until_ready(out)

    # deterministic forward (tanh(mu) path) — no eps needed
    out_det = policy_forward(x, params, action_dim=action_dim,
                             deterministic=True)
    out_det = jax.block_until_ready(out_det)

    # sanity check against pure-JAX reference (same bf16/padded params)
    ref = policy_forward_ref(x, params, eps, action_dim=action_dim,
                             deterministic=False)
    ref_det = policy_forward_ref(x, params, eps, action_dim=action_dim,
                                 deterministic=True)
    assert out.shape == (batch, action_dim)
    assert out_det.shape == (batch, action_dim)
    assert jnp.allclose(out, ref, atol=1e-3, rtol=1e-3)
    assert jnp.allclose(out_det, ref_det, atol=1e-3, rtol=1e-3)

    print("KERNEL_OK")
</pallas_src>

<mosaic_0001>
module attributes {stable_mosaic.version = 11 : i64} {
  func.func @_policy_kernel(%arg0: i32, %arg1: memref<8x16xbf16, #tpu.memory_space<vmem>>, %arg2: memref<16x256xbf16, #tpu.memory_space<vmem>>, %arg3: memref<1x256xf32, #tpu.memory_space<vmem>>, %arg4: memref<256x256xbf16, #tpu.memory_space<vmem>>, %arg5: memref<1x256xf32, #tpu.memory_space<vmem>>, %arg6: memref<256x256xbf16, #tpu.memory_space<vmem>>, %arg7: memref<1x256xf32, #tpu.memory_space<vmem>>, %arg8: memref<8x128xf32, #tpu.memory_space<vmem>>, %arg9: memref<8x128xf32, #tpu.memory_space<vmem>>) attributes {dimension_semantics = [#tpu.dimension_semantics<parallel>], iteration_bounds = array<i64: 1>, scalar_prefetch = 0 : i64, scratch_operands = 0 : i64, tpu.core_type = #tpu.core_type<tc>, window_params = [{transform_indices = @transform_0, window_bounds = array<i64: 8, 16>}, {pipeline_mode = #tpu.pipeline_mode<synchronous>, transform_indices = @transform_1, window_bounds = array<i64: 16, 256>}, {pipeline_mode = #tpu.pipeline_mode<synchronous>, transform_indices = @transform_2, window_bounds = array<i64: 1, 256>}, {pipeline_mode = #tpu.pipeline_mode<synchronous>, transform_indices = @transform_3, window_bounds = array<i64: 256, 256>}, {pipeline_mode = #tpu.pipeline_mode<synchronous>, transform_indices = @transform_4, window_bounds = array<i64: 1, 256>}, {pipeline_mode = #tpu.pipeline_mode<synchronous>, transform_indices = @transform_5, window_bounds = array<i64: 256, 256>}, {pipeline_mode = #tpu.pipeline_mode<synchronous>, transform_indices = @transform_6, window_bounds = array<i64: 1, 256>}, {transform_indices = @transform_7, window_bounds = array<i64: 8, 128>}, {transform_indices = @transform_8, window_bounds = array<i64: 8, 128>}]} {
    %c0 = arith.constant 0 : index
    %c0_0 = arith.constant 0 : index
    %0 = vector.load %arg1[%c0, %c0_0] : memref<8x16xbf16, #tpu.memory_space<vmem>>, vector<8x16xbf16>
    %c0_1 = arith.constant 0 : index
    %c0_2 = arith.constant 0 : index
    %1 = vector.load %arg2[%c0_1, %c0_2] : memref<16x256xbf16, #tpu.memory_space<vmem>>, vector<16x256xbf16>
    %cst = arith.constant dense<0.000000e+00> : vector<8x256xf32>
    %2 = tpu.matmul %0, %1, %cst {dimension_numbers = #tpu.dot_dimension_numbers<[1], [0], [0], [1], [0, 0, 1, 1], [], []>} : vector<8x16xbf16>, vector<16x256xbf16>, vector<8x256xf32> -> vector<8x256xf32>
    %c0_3 = arith.constant 0 : index
    %c0_4 = arith.constant 0 : index
    %3 = vector.load %arg3[%c0_3, %c0_4] : memref<1x256xf32, #tpu.memory_space<vmem>>, vector<1x256xf32>
    %4 = vector.broadcast %3 : vector<1x256xf32> to vector<8x256xf32>
    %5 = arith.addf %2, %4 : vector<8x256xf32>
    %cst_5 = arith.constant 0.000000e+00 : f32
    %6 = vector.broadcast %cst_5 : f32 to vector<8x256xf32>
    %7 = arith.maximumf %5, %6 : vector<8x256xf32>
    %8 = arith.truncf %7 : vector<8x256xf32> to vector<8x256xbf16>
    %c0_6 = arith.constant 0 : index
    %c0_7 = arith.constant 0 : index
    %9 = vector.load %arg4[%c0_6, %c0_7] : memref<256x256xbf16, #tpu.memory_space<vmem>>, vector<256x256xbf16>
    %cst_8 = arith.constant dense<0.000000e+00> : vector<8x256xf32>
    %10 = tpu.matmul %8, %9, %cst_8 {dimension_numbers = #tpu.dot_dimension_numbers<[1], [0], [0], [1], [0, 0, 1, 1], [], []>} : vector<8x256xbf16>, vector<256x256xbf16>, vector<8x256xf32> -> vector<8x256xf32>
    %c0_9 = arith.constant 0 : index
    %c0_10 = arith.constant 0 : index
    %11 = vector.load %arg5[%c0_9, %c0_10] : memref<1x256xf32, #tpu.memory_space<vmem>>, vector<1x256xf32>
    %12 = vector.broadcast %11 : vector<1x256xf32> to vector<8x256xf32>
    %13 = arith.addf %10, %12 : vector<8x256xf32>
    %cst_11 = arith.constant 0.000000e+00 : f32
    %14 = vector.broadcast %cst_11 : f32 to vector<8x256xf32>
    %15 = arith.maximumf %13, %14 : vector<8x256xf32>
    %16 = arith.truncf %15 : vector<8x256xf32> to vector<8x256xbf16>
    %c0_12 = arith.constant 0 : index
    %c0_13 = arith.constant 0 : index
    %17 = vector.load %arg6[%c0_12, %c0_13] : memref<256x256xbf16, #tpu.memory_space<vmem>>, vector<256x256xbf16>
    %cst_14 = arith.constant dense<0.000000e+00> : vector<8x256xf32>
    %18 = tpu.matmul %16, %17, %cst_14 {dimension_numbers = #tpu.dot_dimension_numbers<[1], [0], [0], [1], [0, 0, 1, 1], [], []>} : vector<8x256xbf16>, vector<256x256xbf16>, vector<8x256xf32> -> vector<8x256xf32>
    %c0_15 = arith.constant 0 : index
    %c0_16 = arith.constant 0 : index
    %19 = vector.load %arg7[%c0_15, %c0_16] : memref<1x256xf32, #tpu.memory_space<vmem>>, vector<1x256xf32>
    %20 = vector.broadcast %19 : vector<1x256xf32> to vector<8x256xf32>
    %21 = arith.addf %18, %20 : vector<8x256xf32>
    %22 = vector.extract_strided_slice %21 {offsets = [0, 0], sizes = [8, 128], strides = [1, 1]} : vector<8x256xf32> to vector<8x128xf32>
    %23 = vector.extract_strided_slice %21 {offsets = [0, 128], sizes = [8, 128], strides = [1, 1]} : vector<8x256xf32> to vector<8x128xf32>
    %cst_17 = arith.constant -2.000000e+01 : f32
    %cst_18 = arith.constant 2.000000e+00 : f32
    %24 = vector.broadcast %cst_17 : f32 to vector<8x128xf32>
    %25 = arith.maximumf %24, %23 : vector<8x128xf32>
    %26 = vector.broadcast %cst_18 : f32 to vector<8x128xf32>
    %27 = arith.minimumf %26, %25 : vector<8x128xf32>
    %28 = math.exp %27 : vector<8x128xf32>
    %c0_19 = arith.constant 0 : index
    %c0_20 = arith.constant 0 : index
    %29 = vector.load %arg8[%c0_19, %c0_20] : memref<8x128xf32, #tpu.memory_space<vmem>>, vector<8x128xf32>
    %30 = arith.mulf %28, %29 : vector<8x128xf32>
    %31 = arith.addf %22, %30 : vector<8x128xf32>
    %32 = math.tanh %31 : vector<8x128xf32>
    %c0_21 = arith.constant 0 : index
    %c0_22 = arith.constant 0 : index
    %33 = vector.load %arg9[%c0_21, %c0_22] : memref<8x128xf32, #tpu.memory_space<vmem>>, vector<8x128xf32>
    tpu.vector_store %arg9[%c0_21, %c0_22], %32 {strides = array<i32>} : memref<8x128xf32, #tpu.memory_space<vmem>>, vector<8x128xf32>,
    return
  }
  func.func @transform_0(%arg0: i32) -> (i32, i32) {
    %c0_i32 = arith.constant 0 : i32
    %c0_i32_0 = arith.constant 0 : i32
    return %arg0, %c0_i32 : i32, i32
  }
  func.func @transform_1(%arg0: i32) -> (i32, i32) {
    %c0_i32 = arith.constant 0 : i32
    %c0_i32_0 = arith.constant 0 : i32
    %c0_i32_1 = arith.constant 0 : i32
    return %c0_i32, %c0_i32_0 : i32, i32
  }
  func.func @transform_2(%arg0: i32) -> (i32, i32) {
    %c0_i32 = arith.constant 0 : i32
    %c0_i32_0 = arith.constant 0 : i32
    %c0_i32_1 = arith.constant 0 : i32
    return %c0_i32, %c0_i32_0 : i32, i32
  }
  func.func @transform_3(%arg0: i32) -> (i32, i32) {
    %c0_i32 = arith.constant 0 : i32
    %c0_i32_0 = arith.constant 0 : i32
    %c0_i32_1 = arith.constant 0 : i32
    return %c0_i32, %c0_i32_0 : i32, i32
  }
  func.func @transform_4(%arg0: i32) -> (i32, i32) {
    %c0_i32 = arith.constant 0 : i32
    %c0_i32_0 = arith.constant 0 : i32
    %c0_i32_1 = arith.constant 0 : i32
    return %c0_i32, %c0_i32_0 : i32, i32
  }
  func.func @transform_5(%arg0: i32) -> (i32, i32) {
    %c0_i32 = arith.constant 0 : i32
    %c0_i32_0 = arith.constant 0 : i32
    %c0_i32_1 = arith.constant 0 : i32
    return %c0_i32, %c0_i32_0 : i32, i32
  }
  func.func @transform_6(%arg0: i32) -> (i32, i32) {
    %c0_i32 = arith.constant 0 : i32
    %c0_i32_0 = arith.constant 0 : i32
    %c0_i32_1 = arith.constant 0 : i32
    return %c0_i32, %c0_i32_0 : i32, i32
  }
  func.func @transform_7(%arg0: i32) -> (i32, i32) {
    %c0_i32 = arith.constant 0 : i32
    %c0_i32_0 = arith.constant 0 : i32
    return %arg0, %c0_i32 : i32, i32
  }
  func.func @transform_8(%arg0: i32) -> (i32, i32) {
    %c0_i32 = arith.constant 0 : i32
    %c0_i32_0 = arith.constant 0 : i32
    return %arg0, %c0_i32 : i32, i32
  }
}

</mosaic_0001>

<llo_original>
// kernel: tpu_custom_call.1
$region0: #{tpu_custom_call.1}
  #allocation0 [shape = 'u32[]', space=smem, size = 0x4, offset = 0x4, fixed_abs, tag = 'smem constant byte address 0x4 - core index']
  #allocation1 [shape = 'u32[144,128]{1,0:T(1,128)}', space=vmem, size = 0x12000, scoped, tag = 'internal scratch']
  %s0 = inlined_call_operand.hbm [shape: bf16[8,16], index: 0, kind: input, shape index: {}]
  %s1 = inlined_call_operand.hbm [shape: bf16[16,256], index: 1, kind: input, shape index: {}]
  %s2 = inlined_call_operand.vmem [shape: f32[1,256], index: 2, kind: input, shape index: {}]
  %s3 = inlined_call_operand.hbm [shape: bf16[256,256], index: 3, kind: input, shape index: {}]
  %s4 = inlined_call_operand.vmem [shape: f32[1,256], index: 4, kind: input, shape index: {}]
  %s5 = inlined_call_operand.hbm [shape: bf16[256,256], index: 5, kind: input, shape index: {}]
  %s6 = inlined_call_operand.hbm [shape: f32[1,256], index: 6, kind: input, shape index: {}]
  %s7 = inlined_call_operand.vmem [shape: f32[8,128], index: 7, kind: input, shape index: {}]
  %s8 = inlined_call_operand.hbm [shape: f32[8,128], index: 8, kind: output, shape index: {}]
  %s9 = sld [smem:[#allocation0]]
  $region62: #{tpu_custom_call.1} parent=0
    _
  %s11 = ssub.s32 1, %s9
  %s12 = scalar_select 0, %s11, %s9
  $region1: #{tpu_custom_call.1} parent=0
    #allocation2 [shape = 'u8[2048]{0}', space=vmem, size = 0x800, scoped, tag = 'input window, operand 0, single buffered']
    #allocation3 [shape = 's32[1]{0}', space=sflag, size = 0x4, scoped, tag = 'scoped memory for tpu_custom_call.1']
    #allocation4 [shape = 's32[1]{0}', space=sflag, size = 0x4, scoped, tag = 'scoped memory for tpu_custom_call.1']
    #allocation5 [shape = 'u8[8192]{0}', space=vmem, size = 0x2000, scoped, tag = 'input window, operand 1, single buffered']
    #allocation6 [shape = 's32[1]{0}', space=sflag, size = 0x4, scoped, tag = 'scoped memory for tpu_custom_call.1']
    #allocation7 [shape = 'u8[131072]{0}', space=vmem, size = 0x20000, scoped, tag = 'input window, operand 3, single buffered']
    #allocation8 [shape = 'u8[131072]{0}', space=vmem, size = 0x20000, scoped, tag = 'input window, operand 5, single buffered']
    #allocation9 [shape = 's32[1]{0}', space=sflag, size = 0x4, scoped, tag = 'scoped memory for tpu_custom_call.1']
    #allocation10 [shape = 'u8[1024]{0}', space=vmem, size = 0x400, scoped, tag = 'input window, operand 6, single buffered']
    #allocation11 [shape = 'u8[4096]{0}', space=vmem, size = 0x1000, scoped, tag = 'output window, operand 0, single buffered']
    %13 = vsyncpa [#allocation3], 0
    %14 = vsyncpa [#allocation6], 0
    %15 = vsyncpa [#allocation9], 0
    %16 = vsyncpa [#allocation4], 0
    // Predicated region
    $region2: #{tpu_custom_call.1} parent=1 // pred_check
      _
    $region3: #{tpu_custom_call.1} parent=1 // pred_check_branch
      %18 = sbr.rel (0) target = $region5
    $region4: #{tpu_custom_call.1} parent=1 // pred_region
      %s20 = ssub.s32 64, 64
      %21 = vsyncadd [#allocation3], %s20
      %s23 = sshll.u32 [#allocation2], 4
      %s24 = int_to_ptr.vmem [resolvable:$true] %s23
      %26 = dma.hbm_to_vmem [thread:$0]  %s0, 64, %s24, [#allocation3]
    $region5: #{tpu_custom_call.1} parent=1 // pred_fallthru
      _
    // Predicated region
    $region6: #{tpu_custom_call.1} parent=1 // pred_check
      _
    $region7: #{tpu_custom_call.1} parent=1 // pred_check_branch
      %28 = sbr.rel (0) target = $region9
    $region8: #{tpu_custom_call.1} parent=1 // pred_region
      %s30 = ssub.s32 256, 256
      %31 = vsyncadd [#allocation6], %s30
      %s32 = sshll.u32 [#allocation5], 4
      %s33 = int_to_ptr.vmem [resolvable:$true] %s32
      %38 = dma.hbm_to_vmem [thread:$0]  %s1, 256, %s33, [#allocation6], 128, 128, 8
    $region9: #{tpu_custom_call.1} parent=1 // pred_fallthru
      _
    // Predicated region
    $region10: #{tpu_custom_call.1} parent=1 // pred_check
      _
    $region11: #{tpu_custom_call.1} parent=1 // pred_check_branch
      %40 = sbr.rel (0) target = $region13
    $region12: #{tpu_custom_call.1} parent=1 // pred_region
      _
    $region13: #{tpu_custom_call.1} parent=1 // pred_fallthru
      _
    // Predicated region
    $region14: #{tpu_custom_call.1} parent=1 // pred_check
      _
    $region15: #{tpu_custom_call.1} parent=1 // pred_check_branch
      %42 = sbr.rel (0) target = $region17
    $region16: #{tpu_custom_call.1} parent=1 // pred_region
      %s44 = ssub.s32 4096, 4096
      %45 = vsyncadd [#allocation6], %s44
      %s46 = sshll.u32 [#allocation7], 4
      %s47 = int_to_ptr.vmem [resolvable:$true] %s46
      %52 = dma.hbm_to_vmem [thread:$0]  %s3, 4096, %s47, [#allocation6], 128, 128, 8
    $region17: #{tpu_custom_call.1} parent=1 // pred_fallthru
      _
    // Predicated region
    $region18: #{tpu_custom_call.1} parent=1 // pred_check
      _
    $region19: #{tpu_custom_call.1} parent=1 // pred_check_branch
      %54 = sbr.rel (0) target = $region21
    $region20: #{tpu_custom_call.1} parent=1 // pred_region
      _
    $region21: #{tpu_custom_call.1} parent=1 // pred_fallthru
      _
    // Predicated region
    $region22: #{tpu_custom_call.1} parent=1 // pred_check
      _
    $region23: #{tpu_custom_call.1} parent=1 // pred_check_branch
      %56 = sbr.rel (0) target = $region25
    $region24: #{tpu_custom_call.1} parent=1 // pred_region
      %s58 = ssub.s32 4096, 4096
      %59 = vsyncadd [#allocation9], %s58
      %s60 = sshll.u32 [#allocation8], 4
      %s61 = int_to_ptr.vmem [resolvable:$true] %s60
      %66 = dma.hbm_to_vmem [thread:$0]  %s5, 4096, %s61, [#allocation9], 128, 128, 8
    $region25: #{tpu_custom_call.1} parent=1 // pred_fallthru
      _
    // Predicated region
    $region26: #{tpu_custom_call.1} parent=1 // pred_check
      _
    $region27: #{tpu_custom_call.1} parent=1 // pred_check_branch
      %68 = sbr.rel (0) target = $region29
    $region28: #{tpu_custom_call.1} parent=1 // pred_region
      %s70 = ssub.s32 32, 32
      %71 = vsyncadd [#allocation9], %s70
      %s73 = sshll.u32 [#allocation10], 4
      %s74 = int_to_ptr.vmem [resolvable:$true] %s73
      %76 = dma.hbm_to_vmem [thread:$0]  %s6, 32, %s74, [#allocation9]
    $region29: #{tpu_custom_call.1} parent=1 // pred_fallthru
      _
    // Predicated region
    $region30: #{tpu_custom_call.1} parent=1 // pred_check
      _
    $region31: #{tpu_custom_call.1} parent=1 // pred_check_branch
      %78 = sbr.rel (0) target = $region33
    $region32: #{tpu_custom_call.1} parent=1 // pred_region
      _
    $region33: #{tpu_custom_call.1} parent=1 // pred_fallthru
      _
    // Predicated region
    $region34: #{tpu_custom_call.1} parent=1 // pred_check
      _
    $region35: #{tpu_custom_call.1} parent=1 // pred_check_branch
      %80 = sbr.rel (0) target = $region37
    $region36: #{tpu_custom_call.1} parent=1 // pred_region
      %81 = dma.done [#allocation3], 64
    $region37: #{tpu_custom_call.1} parent=1 // pred_fallthru
      _
    // Predicated region
    $region38: #{tpu_custom_call.1} parent=1 // pred_check
      _
    $region39: #{tpu_custom_call.1} parent=1 // pred_check_branch
      %83 = sbr.rel (0) target = $region41
    $region40: #{tpu_custom_call.1} parent=1 // pred_region
      %84 = dma.done [#allocation6], 256
    $region41: #{tpu_custom_call.1} parent=1 // pred_fallthru
      _
    // Predicated region
    $region42: #{tpu_custom_call.1} parent=1 // pred_check
      _
    $region43: #{tpu_custom_call.1} parent=1 // pred_check_branch
      %86 = sbr.rel (0) target = $region45
    $region44: #{tpu_custom_call.1} parent=1 // pred_region
      %87 = dma.done [#allocation6], 4096
    $region45: #{tpu_custom_call.1} parent=1 // pred_fallthru
      _
    // Predicated region
    $region46: #{tpu_custom_call.1} parent=1 // pred_check
      _
    $region47: #{tpu_custom_call.1} parent=1 // pred_check_branch
      %89 = sbr.rel (0) target = $region49
    $region48: #{tpu_custom_call.1} parent=1 // pred_region
      %90 = dma.done [#allocation9], 4096
    $region49: #{tpu_custom_call.1} parent=1 // pred_fallthru
      _
    // Predicated region
    $region50: #{tpu_custom_call.1} parent=1 // pred_check
      _
    $region51: #{tpu_custom_call.1} parent=1 // pred_check_branch
      %92 = sbr.rel (0) target = $region53
    $region52: #{tpu_custom_call.1} parent=1 // pred_region
      %93 = dma.done [#allocation9], 32
    $region53: #{tpu_custom_call.1} parent=1 // pred_fallthru
      _
    %v95 = vld [vmem:[#allocation2] sm:$0xf]
    %v96 = vld [vmem:[#allocation5] sm:$0xff]
    %v97 = vld [vmem:[#allocation5 + $0x8] sm:$0xff]
    %v98 = vld [vmem:[%s2] sm:$0x3]
    %v100 = vlaneseq
    %v101 = vshrl.u32 %v100, 7
    %v102 = vsub.s32 0, %v101
    %v103 = vrot.slane %v98, %v102
    %v104 = vlaneseq
    %v105 = vshrl.u32 %v104, 7
    %v106 = vsub.s32 1, %v105
    %v107 = vrot.slane %v98, %v106
    %v112 = vunpack.c.l.b16 %v96
    %v113 = vunpack.c.h.b16 %v96
    %v114 = vunpack.c.l.b16 %v97
    %v115 = vunpack.c.h.b16 %v97
    %v116 = vpack.c.b16 %v114, %v112
    %v117 = vpack.c.b16 %v115, %v113
    %vm120 = vcmask 130048
    %v122 = vsel %vm120, %v95, 0
    %124 = vmatprep.subr.bf16.mxu0 0
    %125 = vmatpush1.bf16.msra.mxu0 0
    %126 = vmatprep.subr.bf16.mxu0 0
    %127 = vmatpush1.bf16.msra.mxu0 0
    %128 = vmatprep.subr.bf16.mxu0 0
    %129 = vmatpush1.bf16.msra.mxu0 0
    %130 = vmatprep.subr.bf16.mxu0 0
    %131 = vmatpush1.bf16.msra.mxu0 0
    %132 = vmatprep.subr.bf16.mxu0 0
    %133 = vmatpush1.bf16.msra.mxu0 0
    %134 = vmatprep.subr.bf16.mxu0 0
    %135 = vmatpush1.bf16.msra.mxu0 0
    %136 = vmatprep.subr.bf16.mxu0 0
    %137 = vmatpush1.bf16.msra.mxu0 0
    %138 = vmatprep.subr.bf16.mxu0 %v117
    %139 = vmatpush1.bf16.msra.mxu0 %v116
    %140 = vmatprep.subr.bf16.mxu0 0
    %141 = vmatpush2.bf16.msra.mxu0 0
    %142 = vmatprep.subr.bf16.mxu0 0
    %143 = vmatpush2.bf16.msra.mxu0 0
    %144 = vmatprep.subr.bf16.mxu0 0
    %145 = vmatpush2.bf16.msra.mxu0 0
    %146 = vmatprep.subr.bf16.mxu0 0
    %147 = vmatpush2.bf16.msra.mxu0 0
    %148 = vmatprep.subr.bf16.mxu0 0
    %149 = vmatpush2.bf16.msra.mxu0 0
    %150 = vmatprep.subr.bf16.mxu0 0
    %151 = vmatpush2.bf16.msra.mxu0 0
    %152 = vmatprep.subr.bf16.mxu0 0
    %153 = vmatpush2.bf16.msra.mxu0 0
    %154 = vmatprep.subr.bf16.mxu0 0
    %155 = vmatpush2.bf16.msra.mxu0 0
    %156 = vmatprep.mubr.bf16.mxu0 0
    %157 = vmatmul.mubr.bf16.gmra.mxu0 %v122
    %v158 = vpop.f32.mrf.mxu0
    %v159 = vadd.f32 %v103, %v158
    %v160 = vpop.f32.mrf.mxu0
    %v161 = vadd.f32 %v107, %v160
    %v162 = vpop.f32.mrf.mxu0
    %v163 = vpop.f32.mrf.mxu0
    %164 = vdwg.mxu0
    %v165 = vmax.f32 %v159, 0.0
    %v166 = vmax.f32 %v161, 0.0
    %v167 = vpack.c.bf16 %v165, %v165
    %v168 = vpack.c.bf16 %v166, %v166
    %v169 = vld [vmem:[#allocation7] sm:$0xff]
    %v170 = vld [vmem:[#allocation7 + $0x8] sm:$0xff]
    %v171 = vld [vmem:[#allocation7 + $0x10] sm:$0xff]
    %v172 = vld [vmem:[#allocation7 + $0x18] sm:$0xff]
    %v173 = vld [vmem:[#allocation7 + $0x20] sm:$0xff]
    %v174 = vld [vmem:[#allocation7 + $0x28] sm:$0xff]
    %v175 = vld [vmem:[#allocation7 + $0x30] sm:$0xff]
    %v176 = vld [vmem:[#allocation7 + $0x38] sm:$0xff]
    %v177 = vld [vmem:[#allocation7 + $0x40] sm:$0xff]
    %v178 = vld [vmem:[#allocation7 + $0x48] sm:$0xff]
    %v179 = vld [vmem:[#allocation7 + $0x50] sm:$0xff]
    %v180 = vld [vmem:[#allocation7 + $0x58] sm:$0xff]
    %v181 = vld [vmem:[#allocation7 + $0x60] sm:$0xff]
    %v182 = vld [vmem:[#allocation7 + $0x68] sm:$0xff]
    %v183 = vld [vmem:[#allocation7 + $0x70] sm:$0xff]
    %v184 = vld [vmem:[#allocation7 + $0x78] sm:$0xff]
    %v185 = vld [vmem:[#allocation7 + $0x80] sm:$0xff]
    %v186 = vld [vmem:[#allocation7 + $0x88] sm:$0xff]
    %v187 = vld [vmem:[#allocation7 + $0x90] sm:$0xff]
    %v188 = vld [vmem:[#allocation7 + $0x98] sm:$0xff]
    %v189 = vld [vmem:[#allocation7 + $0xa0] sm:$0xff]
    %v190 = vld [vmem:[#allocation7 + $0xa8] sm:$0xff]
    %v191 = vld [vmem:[#allocation7 + $0xb0] sm:$0xff]
    %v192 = vld [vmem:[#allocation7 + $0xb8] sm:$0xff]
    %v193 = vld [vmem:[#allocation7 + $0xc0] sm:$0xff]
    %v194 = vld [vmem:[#allocation7 + $0xc8] sm:$0xff]
    %v195 = vld [vmem:[#allocation7 + $0xd0] sm:$0xff]
    %v196 = vld [vmem:[#allocation7 + $0xd8] sm:$0xff]
    %v197 = vld [vmem:[#allocation7 + $0xe0] sm:$0xff]
    %v198 = vld [vmem:[#allocation7 + $0xe8] sm:$0xff]
    %v199 = vld [vmem:[#allocation7 + $0xf0] sm:$0xff]
    %v200 = vld [vmem:[#allocation7 + $0xf8] sm:$0xff]
    %v201 = vld [vmem:[%s4] sm:$0x3]
    %v203 = vlaneseq
    %v204 = vshrl.u32 %v203, 7
    %v205 = vsub.s32 0, %v204
    %v206 = vrot.slane %v201, %v205
    %v207 = vlaneseq
    %v208 = vshrl.u32 %v207, 7
    %v209 = vsub.s32 1, %v208
    %v210 = vrot.slane %v201, %v209
    %v245 = vunpack.c.l.b16 %v169
    %v246 = vunpack.c.h.b16 %v169
    %v247 = vunpack.c.l.b16 %v170
    %v248 = vunpack.c.h.b16 %v170
    %v249 = vunpack.c.l.b16 %v171
    %v250 = vunpack.c.h.b16 %v171
    %v251 = vunpack.c.l.b16 %v172
    %v252 = vunpack.c.h.b16 %v172
    %v253 = vunpack.c.l.b16 %v173
    %v254 = vunpack.c.h.b16 %v173
    %v255 = vunpack.c.l.b16 %v174
    %v256 = vunpack.c.h.b16 %v174
    %v257 = vunpack.c.l.b16 %v175
    %v258 = vunpack.c.h.b16 %v175
    %v259 = vunpack.c.l.b16 %v176
    %v260 = vunpack.c.h.b16 %v176
    %v261 = vunpack.c.l.b16 %v177
    %v262 = vunpack.c.h.b16 %v177
    %v263 = vunpack.c.l.b16 %v178
    %v264 = vunpack.c.h.b16 %v178
    %v265 = vunpack.c.l.b16 %v179
    %v266 = vunpack.c.h.b16 %v179
    %v267 = vunpack.c.l.b16 %v180
    %v268 = vunpack.c.h.b16 %v180
    %v269 = vunpack.c.l.b16 %v181
    %v270 = vunpack.c.h.b16 %v181
    %v271 = vunpack.c.l.b16 %v182
    %v272 = vunpack.c.h.b16 %v182
    %v273 = vunpack.c.l.b16 %v183
    %v274 = vunpack.c.h.b16 %v183
    %v275 = vunpack.c.l.b16 %v184
    %v276 = vunpack.c.h.b16 %v184
    %v277 = vunpack.c.l.b16 %v185
    %v278 = vunpack.c.h.b16 %v185
    %v279 = vunpack.c.l.b16 %v186
    %v280 = vunpack.c.h.b16 %v186
    %v281 = vunpack.c.l.b16 %v187
    %v282 = vunpack.c.h.b16 %v187
    %v283 = vunpack.c.l.b16 %v188
    %v284 = vunpack.c.h.b16 %v188
    %v285 = vunpack.c.l.b16 %v189
    %v286 = vunpack.c.h.b16 %v189
    %v287 = vunpack.c.l.b16 %v190
    %v288 = vunpack.c.h.b16 %v190
    %v289 = vunpack.c.l.b16 %v191
    %v290 = vunpack.c.h.b16 %v191
    %v291 = vunpack.c.l.b16 %v192
    %v292 = vunpack.c.h.b16 %v192
    %v293 = vunpack.c.l.b16 %v193
    %v294 = vunpack.c.h.b16 %v193
    %v295 = vunpack.c.l.b16 %v194
    %v296 = vunpack.c.h.b16 %v194
    %v297 = vunpack.c.l.b16 %v195
    %v298 = vunpack.c.h.b16 %v195
    %v299 = vunpack.c.l.b16 %v196
    %v300 = vunpack.c.h.b16 %v196
    %v301 = vunpack.c.l.b16 %v197
    %v302 = vunpack.c.h.b16 %v197
    %v303 = vunpack.c.l.b16 %v198
    %v304 = vunpack.c.h.b16 %v198
    %v305 = vunpack.c.l.b16 %v199
    %v306 = vunpack.c.h.b16 %v199
    %v307 = vunpack.c.l.b16 %v200
    %v308 = vunpack.c.h.b16 %v200
    %v309 = vpack.c.b16 %v247, %v245
    %v310 = vpack.c.b16 %v248, %v246
    %v311 = vpack.c.b16 %v251, %v249
    %v312 = vpack.c.b16 %v252, %v250
    %v313 = vpack.c.b16 %v255, %v253
    %v314 = vpack.c.b16 %v256, %v254
    %v315 = vpack.c.b16 %v259, %v257
    %v316 = vpack.c.b16 %v260, %v258
    %v317 = vpack.c.b16 %v263, %v261
    %v318 = vpack.c.b16 %v264, %v262
    %v319 = vpack.c.b16 %v267, %v265
    %v320 = vpack.c.b16 %v268, %v266
    %v321 = vpack.c.b16 %v271, %v269
    %v322 = vpack.c.b16 %v272, %v270
    %v323 = vpack.c.b16 %v275, %v273
    %v324 = vpack.c.b16 %v276, %v274
    %v325 = vpack.c.b16 %v279, %v277
    %v326 = vpack.c.b16 %v280, %v278
    %v327 = vpack.c.b16 %v283, %v281
    %v328 = vpack.c.b16 %v284, %v282
    %v329 = vpack.c.b16 %v287, %v285
    %v330 = vpack.c.b16 %v288, %v286
    %v331 = vpack.c.b16 %v291, %v289
    %v332 = vpack.c.b16 %v292, %v290
    %v333 = vpack.c.b16 %v295, %v293
    %v334 = vpack.c.b16 %v296, %v294
    %v335 = vpack.c.b16 %v299, %v297
    %v336 = vpack.c.b16 %v300, %v298
    %v337 = vpack.c.b16 %v303, %v301
    %v338 = vpack.c.b16 %v304, %v302
    %v339 = vpack.c.b16 %v307, %v305
    %v340 = vpack.c.b16 %v308, %v306
    %373 = vmatprep.subr.bf16.mxu0 %v324
    %374 = vmatpush1.bf16.msra.mxu0 %v323
    %375 = vmatprep.subr.bf16.mxu0 %v322
    %376 = vmatpush1.bf16.msra.mxu0 %v321
    %377 = vmatprep.subr.bf16.mxu0 %v320
    %378 = vmatpush1.bf16.msra.mxu0 %v319
    %379 = vmatprep.subr.bf16.mxu0 %v318
    %380 = vmatpush1.bf16.msra.mxu0 %v317
    %381 = vmatprep.subr.bf16.mxu0 %v316
    %382 = vmatpush1.bf16.msra.mxu0 %v315
    %383 = vmatprep.subr.bf16.mxu0 %v314
    %384 = vmatpush1.bf16.msra.mxu0 %v313
    %385 = vmatprep.subr.bf16.mxu0 %v312
    %386 = vmatpush1.bf16.msra.mxu0 %v311
    %387 = vmatprep.subr.bf16.mxu0 %v310
    %388 = vmatpush1.bf16.msra.mxu0 %v309
    %389 = vmatprep.subr.bf16.mxu0 %v340
    %390 = vmatpush2.bf16.msra.mxu0 %v339
    %391 = vmatprep.subr.bf16.mxu0 %v338
    %392 = vmatpush2.bf16.msra.mxu0 %v337
    %393 = vmatprep.subr.bf16.mxu0 %v336
    %394 = vmatpush2.bf16.msra.mxu0 %v335
    %395 = vmatprep.subr.bf16.mxu0 %v334
    %396 = vmatpush2.bf16.msra.mxu0 %v333
    %397 = vmatprep.subr.bf16.mxu0 %v332
    %398 = vmatpush2.bf16.msra.mxu0 %v331
    %399 = vmatprep.subr.bf16.mxu0 %v330
    %400 = vmatpush2.bf16.msra.mxu0 %v329
    %401 = vmatprep.subr.bf16.mxu0 %v328
    %402 = vmatpush2.bf16.msra.mxu0 %v327
    %403 = vmatprep.subr.bf16.mxu0 %v326
    %404 = vmatpush2.bf16.msra.mxu0 %v325
    %405 = vmatprep.mubr.bf16.mxu0 %v168
    %406 = vmatmul.mubr.bf16.gmra.mxu0 %v167
    %v407 = vpop.f32.mrf.mxu0
    %v408 = vadd.f32 %v206, %v407
    %v409 = vpop.f32.mrf.mxu0
    %v410 = vadd.f32 %v210, %v409
    %v411 = vpop.f32.mrf.mxu0
    %v412 = vpop.f32.mrf.mxu0
    %413 = vdwg.mxu0
    %v414 = vmax.f32 %v408, 0.0
    %v415 = vmax.f32 %v410, 0.0
    %v416 = vpack.c.bf16 %v414, %v414
    %v417 = vpack.c.bf16 %v415, %v415
    %v418 = vld [vmem:[#allocation8] sm:$0xff]
    %v419 = vld [vmem:[#allocation8 + $0x8] sm:$0xff]
    %v420 = vld [vmem:[#allocation8 + $0x10] sm:$0xff]
    %v421 = vld [vmem:[#allocation8 + $0x18] sm:$0xff]
    %v422 = vld [vmem:[#allocation8 + $0x20] sm:$0xff]
    %v423 = vld [vmem:[#allocation8 + $0x28] sm:$0xff]
    %v424 = vld [vmem:[#allocation8 + $0x30] sm:$0xff]
    %v425 = vld [vmem:[#allocation8 + $0x38] sm:$0xff]
    %v426 = vld [vmem:[#allocation8 + $0x40] sm:$0xff]
    %v427 = vld [vmem:[#allocation8 + $0x48] sm:$0xff]
    %v428 = vld [vmem:[#allocation8 + $0x50] sm:$0xff]
    %v429 = vld [vmem:[#allocation8 + $0x58] sm:$0xff]
    %v430 = vld [vmem:[#allocation8 + $0x60] sm:$0xff]
    %v431 = vld [vmem:[#allocation8 + $0x68] sm:$0xff]
    %v432 = vld [vmem:[#allocation8 + $0x70] sm:$0xff]
    %v433 = vld [vmem:[#allocation8 + $0x78] sm:$0xff]
    %v434 = vld [vmem:[#allocation8 + $0x80] sm:$0xff]
    %v435 = vld [vmem:[#allocation8 + $0x88] sm:$0xff]
    %v436 = vld [vmem:[#allocation8 + $0x90] sm:$0xff]
    %v437 = vld [vmem:[#allocation8 + $0x98] sm:$0xff]
    %v438 = vld [vmem:[#allocation8 + $0xa0] sm:$0xff]
    %v439 = vld [vmem:[#allocation8 + $0xa8] sm:$0xff]
    %v440 = vld [vmem:[#allocation8 + $0xb0] sm:$0xff]
    %v441 = vld [vmem:[#allocation8 + $0xb8] sm:$0xff]
    %v442 = vld [vmem:[#allocation8 + $0xc0] sm:$0xff]
    %v443 = vld [vmem:[#allocation8 + $0xc8] sm:$0xff]
    %v444 = vld [vmem:[#allocation8 + $0xd0] sm:$0xff]
    %v445 = vld [vmem:[#allocation8 + $0xd8] sm:$0xff]
    %v446 = vld [vmem:[#allocation8 + $0xe0] sm:$0xff]
    %v447 = vld [vmem:[#allocation8 + $0xe8] sm:$0xff]
    %v448 = vld [vmem:[#allocation8 + $0xf0] sm:$0xff]
    %v449 = vld [vmem:[#allocation8 + $0xf8] sm:$0xff]
    %v450 = vld [vmem:[#allocation10] sm:$0x3]
    %v452 = vlaneseq
    %v453 = vshrl.u32 %v452, 7
    %v454 = vsub.s32 0, %v453
    %v455 = vrot.slane %v450, %v454
    %v456 = vlaneseq
    %v457 = vshrl.u32 %v456, 7
    %v458 = vsub.s32 1, %v457
    %v459 = vrot.slane %v450, %v458
    %v494 = vunpack.c.l.b16 %v418
    %v495 = vunpack.c.h.b16 %v418
    %v496 = vunpack.c.l.b16 %v419
    %v497 = vunpack.c.h.b16 %v419
    %v498 = vunpack.c.l.b16 %v420
    %v499 = vunpack.c.h.b16 %v420
    %v500 = vunpack.c.l.b16 %v421
    %v501 = vunpack.c.h.b16 %v421
    %v502 = vunpack.c.l.b16 %v422
    %v503 = vunpack.c.h.b16 %v422
    %v504 = vunpack.c.l.b16 %v423
    %v505 = vunpack.c.h.b16 %v423
    %v506 = vunpack.c.l.b16 %v424
    %v507 = vunpack.c.h.b16 %v424
    %v508 = vunpack.c.l.b16 %v425
    %v509 = vunpack.c.h.b16 %v425
    %v510 = vunpack.c.l.b16 %v426
    %v511 = vunpack.c.h.b16 %v426
    %v512 = vunpack.c.l.b16 %v427
    %v513 = vunpack.c.h.b16 %v427
    %v514 = vunpack.c.l.b16 %v428
    %v515 = vunpack.c.h.b16 %v428
    %v516 = vunpack.c.l.b16 %v429
    %v517 = vunpack.c.h.b16 %v429
    %v518 = vunpack.c.l.b16 %v430
    %v519 = vunpack.c.h.b16 %v430
    %v520 = vunpack.c.l.b16 %v431
    %v521 = vunpack.c.h.b16 %v431
    %v522 = vunpack.c.l.b16 %v432
    %v523 = vunpack.c.h.b16 %v432
    %v524 = vunpack.c.l.b16 %v433
    %v525 = vunpack.c.h.b16 %v433
    %v526 = vunpack.c.l.b16 %v434
    %v527 = vunpack.c.h.b16 %v434
    %v528 = vunpack.c.l.b16 %v435
    %v529 = vunpack.c.h.b16 %v435
    %v530 = vunpack.c.l.b16 %v436
    %v531 = vunpack.c.h.b16 %v436
    %v532 = vunpack.c.l.b16 %v437
    %v533 = vunpack.c.h.b16 %v437
    %v534 = vunpack.c.l.b16 %v438
    %v535 = vunpack.c.h.b16 %v438
    %v536 = vunpack.c.l.b16 %v439
    %v537 = vunpack.c.h.b16 %v439
    %v538 = vunpack.c.l.b16 %v440
    %v539 = vunpack.c.h.b16 %v440
    %v540 = vunpack.c.l.b16 %v441
    %v541 = vunpack.c.h.b16 %v441
    %v542 = vunpack.c.l.b16 %v442
    %v543 = vunpack.c.h.b16 %v442
    %v544 = vunpack.c.l.b16 %v443
    %v545 = vunpack.c.h.b16 %v443
    %v546 = vunpack.c.l.b16 %v444
    %v547 = vunpack.c.h.b16 %v444
    %v548 = vunpack.c.l.b16 %v445
    %v549 = vunpack.c.h.b16 %v445
    %v550 = vunpack.c.l.b16 %v446
    %v551 = vunpack.c.h.b16 %v446
    %v552 = vunpack.c.l.b16 %v447
    %v553 = vunpack.c.h.b16 %v447
    %v554 = vunpack.c.l.b16 %v448
    %v555 = vunpack.c.h.b16 %v448
    %v556 = vunpack.c.l.b16 %v449
    %v557 = vunpack.c.h.b16 %v449
    %v558 = vpack.c.b16 %v496, %v494
    %v559 = vpack.c.b16 %v497, %v495
    %v560 = vpack.c.b16 %v500, %v498
    %v561 = vpack.c.b16 %v501, %v499
    %v562 = vpack.c.b16 %v504, %v502
    %v563 = vpack.c.b16 %v505, %v503
    %v564 = vpack.c.b16 %v508, %v506
    %v565 = vpack.c.b16 %v509, %v507
    %v566 = vpack.c.b16 %v512, %v510
    %v567 = vpack.c.b16 %v513, %v511
    %v568 = vpack.c.b16 %v516, %v514
    %v569 = vpack.c.b16 %v517, %v515
    %v570 = vpack.c.b16 %v520, %v518
    %v571 = vpack.c.b16 %v521, %v519
    %v572 = vpack.c.b16 %v524, %v522
    %v573 = vpack.c.b16 %v525, %v523
    %v574 = vpack.c.b16 %v528, %v526
    %v575 = vpack.c.b16 %v529, %v527
    %v576 = vpack.c.b16 %v532, %v530
    %v577 = vpack.c.b16 %v533, %v531
    %v578 = vpack.c.b16 %v536, %v534
    %v579 = vpack.c.b16 %v537, %v535
    %v580 = vpack.c.b16 %v540, %v538
    %v581 = vpack.c.b16 %v541, %v539
    %v582 = vpack.c.b16 %v544, %v542
    %v583 = vpack.c.b16 %v545, %v543
    %v584 = vpack.c.b16 %v548, %v546
    %v585 = vpack.c.b16 %v549, %v547
    %v586 = vpack.c.b16 %v552, %v550
    %v587 = vpack.c.b16 %v553, %v551
    %v588 = vpack.c.b16 %v556, %v554
    %v589 = vpack.c.b16 %v557, %v555
    %622 = vmatprep.subr.bf16.mxu0 %v573
    %623 = vmatpush1.bf16.msra.mxu0 %v572
    %624 = vmatprep.subr.bf16.mxu0 %v571
    %625 = vmatpush1.bf16.msra.mxu0 %v570
    %626 = vmatprep.subr.bf16.mxu0 %v569
    %627 = vmatpush1.bf16.msra.mxu0 %v568
    %628 = vmatprep.subr.bf16.mxu0 %v567
    %629 = vmatpush1.bf16.msra.mxu0 %v566
    %630 = vmatprep.subr.bf16.mxu0 %v565
    %631 = vmatpush1.bf16.msra.mxu0 %v564
    %632 = vmatprep.subr.bf16.mxu0 %v563
    %633 = vmatpush1.bf16.msra.mxu0 %v562
    %634 = vmatprep.subr.bf16.mxu0 %v561
    %635 = vmatpush1.bf16.msra.mxu0 %v560
    %636 = vmatprep.subr.bf16.mxu0 %v559
    %637 = vmatpush1.bf16.msra.mxu0 %v558
    %638 = vmatprep.subr.bf16.mxu0 %v589
    %639 = vmatpush2.bf16.msra.mxu0 %v588
    %640 = vmatprep.subr.bf16.mxu0 %v587
    %641 = vmatpush2.bf16.msra.mxu0 %v586
    %642 = vmatprep.subr.bf16.mxu0 %v585
    %643 = vmatpush2.bf16.msra.mxu0 %v584
    %644 = vmatprep.subr.bf16.mxu0 %v583
    %645 = vmatpush2.bf16.msra.mxu0 %v582
    %646 = vmatprep.subr.bf16.mxu0 %v581
    %647 = vmatpush2.bf16.msra.mxu0 %v580
    %648 = vmatprep.subr.bf16.mxu0 %v579
    %649 = vmatpush2.bf16.msra.mxu0 %v578
    %650 = vmatprep.subr.bf16.mxu0 %v577
    %651 = vmatpush2.bf16.msra.mxu0 %v576
    %652 = vmatprep.subr.bf16.mxu0 %v575
    %653 = vmatpush2.bf16.msra.mxu0 %v574
    %654 = vmatprep.mubr.bf16.mxu0 %v417
    %655 = vmatmul.mubr.bf16.gmra.mxu0 %v416
    %v656 = vpop.f32.mrf.mxu0
    %v657 = vadd.f32 %v455, %v656
    %v658 = vpop.f32.mrf.mxu0
    %v659 = vadd.f32 %v459, %v658
    %v660 = vpop.f32.mrf.mxu0
    %v661 = vpop.f32.mrf.mxu0
    %662 = vdwg.mxu0
    %v663 = vmax.f32 %v659, -20.0
    %v664 = vmin.f32 %v663, 2.0
    %v665 = vmul.f32 %v664, 1.442695
    %v666 = vpow.pop %v665
    %v667 = vld [vmem:[%s7] sm:$0xff]
    %v668 = vmul.f32 %v666, %v667
    %v669 = vadd.f32 %v657, %v668
    %v670 = vtanh.pop %v669
    %671 = vst [vmem:[#allocation11] sm:$0xff] %v670
    // Predicated region
    $region54: #{tpu_custom_call.1} parent=1 // pred_check
      _
    $region55: #{tpu_custom_call.1} parent=1 // pred_check_branch
      %673 = sbr.rel (0) target = $region57
    $region56: #{tpu_custom_call.1} parent=1 // pred_region
      %s675 = ssub.s32 128, 128
      %676 = vsyncadd [#allocation4], %s675
      %s678 = sshll.u32 [#allocation11], 4
      %s679 = int_to_ptr.vmem [resolvable:$true] %s678
      %681 = dma.vmem_to_hbm [thread:$0]  %s679, 128, %s8, [#allocation4]
    $region57: #{tpu_custom_call.1} parent=1 // pred_fallthru
      _
    // Predicated region
    $region58: #{tpu_custom_call.1} parent=1 // pred_check
      _
    $region59: #{tpu_custom_call.1} parent=1 // pred_check_branch
      %683 = sbr.rel (0) target = $region61
    $region60: #{tpu_custom_call.1} parent=1 // pred_region
      %684 = dma.done [#allocation4], 128
    $region61: #{tpu_custom_call.1} parent=1 // pred_fallthru
      _
    %685 = vsyncpa [#allocation3], 1
    %686 = vsyncpa [#allocation6], 1
    %687 = vsyncpa [#allocation9], 1
    %688 = vsyncpa [#allocation4], 1

</llo_original>
